<compile_context>
chip_gen: v7x
topology: tpu7x:2x2x1
jax: 0.10.0
libtpu: 0.0.40
codegen_flags: <defaults>
</compile_context>

<pallas_src>
import functools

import jax
import jax.numpy as jnp
from jax.experimental import pallas as pl
from jax.experimental.pallas import tpu as pltpu

_MiB = 1024 * 1024


def _round_up(x, m):
    return ((x + m - 1) // m) * m


def _simple_lr_kernel(x_ref, w_ref, b_ref, o_ref):
    # x_ref: (TILE_B, F)    VMEM (x dtype)  -- one batch tile (pipelined)
    # w_ref: (1, F)         VMEM (x dtype)  -- full weight row, resident
    # b_ref: (1, 1)         SMEM f32        -- scalar bias
    # o_ref: (1, 1, TILE_B) VMEM f32        -- lane-dense output row
    #
    # logits[0, b] = sum_f w[0, f] * x[b, f]; contracting F on both operands
    # lands the result directly as (1, TILE_B) with TILE_B on lanes, so the
    # store is a full-lane (unmasked) vst whenever TILE_B % 128 == 0.
    logits = jax.lax.dot_general(
        w_ref[...],
        x_ref[...],
        dimension_numbers=(((1,), (1,)), ((), ())),
        preferred_element_type=jnp.float32,
    )  # (1, TILE_B) f32
    # TODO(synk): if bundle dumps on v7x show the MXU push slot binding,
    # cast x_ref[...] to bf16 for the dot (keep f32 accumulation).
    o_ref[0] = jax.nn.sigmoid(logits + b_ref[0, 0])


def _tpu_vmem_capacity_bytes():
    try:
        return int(pltpu.get_tpu_info().vmem_capacity_bytes)
    except Exception:
        return 64 * _MiB  # conservative: v7x per-TC physical VMEM


def _vmem_limit_bytes():
    cap = _tpu_vmem_capacity_bytes()
    if cap >= 100 * _MiB:          # v5e / v6e: 128 MiB physical
        return 96 * _MiB
    # v7x (64 MiB) or smaller/unknown: keep headroom below physical VMEM.
    return max(8 * _MiB, min(48 * _MiB, cap - 16 * _MiB))


def _tile_dimension_semantics():
    # Only CORE_PARALLEL actually splits a grid axis across v7x's two
    # TensorCores; "parallel" vs "arbitrary" barely changes codegen.
    try:
        info = pltpu.get_tpu_info()
        name = str(getattr(info, "chip_version", "")).lower()
        if "7" in name:
            return (pltpu.CORE_PARALLEL,)
    except Exception:
        pass
    return ("parallel",)


def _choose_tile_b(batch, n_features, x_itemsize, max_tile_b, vmem_limit_bytes):
    """Largest batch tile whose double-buffered, lane-padded footprint fits."""
    f_pad = _round_up(n_features, 128)
    x_row_bytes = f_pad * x_itemsize          # one lane-padded x row in VMEM
    w_bytes = 8 * f_pad * x_itemsize          # resident (1, F) weight, sublane-padded
    headroom = 4 * _MiB                       # compiler-internal scratch etc.
    out_bytes_per_row = 2 * 8 * 4             # 2 bufs * 8 sublanes * f32 lane
    avail = vmem_limit_bytes - headroom - 2 * w_bytes
    rows = max(8, avail // (2 * x_row_bytes + out_bytes_per_row))
    if rows >= 128:
        rows = (rows // 128) * 128            # lane-dense output stores
    else:
        # Very wide F: keep sublane alignment; output stores become masked.
        # TODO(synk): for F wide enough that even 8 rows overflow VMEM, add an
        # F-reduction grid axis with an f32 accumulator + pl.when finalize.
        rows = (rows // 8) * 8
    tile_b = int(min(rows, max_tile_b))
    if batch <= tile_b:
        return batch                          # single full-batch tile
    return tile_b


@functools.partial(jax.jit, static_argnames=("max_tile_b",))
def simple_lr_forward(x, weight, bias, *, max_tile_b=65536):
    """sigmoid(x @ weight.T + bias) == torch.sigmoid(nn.Linear(F, 1)(x)).

    x:      (B, F) float32 or bfloat16 (consumed in its incoming dtype)
    weight: (1, F)  (PyTorch nn.Linear weight layout, used as-is)
    bias:   (1,)
    returns (B, 1) float32
    """
    B, F = x.shape
    assert weight.shape == (1, F)

    w = weight.astype(x.dtype)                    # tiny; match x for the MXU
    b_sm = bias.reshape(1, 1).astype(jnp.float32)

    vmem_limit = _vmem_limit_bytes()
    tile_b = _choose_tile_b(B, F, x.dtype.itemsize, max_tile_b, vmem_limit)
    num_tiles = pl.cdiv(B, tile_b)

    x_tile_bytes = tile_b * _round_up(F, 128) * x.dtype.itemsize
    x_spec_kwargs = {}
    if num_tiles >= 4 and x_tile_bytes < 2 * _MiB:
        # VMEM (or caller) forced a small tile: deepen the x pipeline.
        x_spec_kwargs["pipeline_mode"] = pl.Buffered(3)

    cost = pl.CostEstimate(
        flops=2 * B * F,
        transcendentals=B,
        bytes_accessed=B * F * x.dtype.itemsize + F * w.dtype.itemsize + 4 + B * 4,
    )

    out = pl.pallas_call(
        _simple_lr_kernel,
        out_shape=jax.ShapeDtypeStruct((num_tiles, 1, tile_b), jnp.float32),
        grid_spec=pl.GridSpec(
            grid=(num_tiles,),
            in_specs=[
                # x: one batch tile per grid step (ragged last block allowed)
                pl.BlockSpec((tile_b, F), lambda i: (i, 0), **x_spec_kwargs),
                # weight: full (1, F) row, same block every step (resident)
                pl.BlockSpec((1, F), lambda i: (0, 0)),
                # bias: scalar in SMEM
                pl.BlockSpec(memory_space=pltpu.MemorySpace.SMEM),
            ],
            # lane-dense per-tile output row
            out_specs=pl.BlockSpec((1, 1, tile_b), lambda i: (i, 0, 0)),
        ),
        compiler_params=pltpu.CompilerParams(
            dimension_semantics=_tile_dimension_semantics(),
            vmem_limit_bytes=vmem_limit,
        ),
        cost_estimate=cost,
    )(x, w, b_sm)

    # (num_tiles, 1, tile_b) -> (B, 1); ragged-tile garbage rows are dropped.
    return out.reshape(-1)[:B].reshape(B, 1)


if __name__ == "__main__":
    key = jax.random.PRNGKey(0)
    k_x, k_w, k_b = jax.random.split(key, 3)

    batch = 300           # not a multiple of 128 -> exercises the ragged tile
    n_features = 32

    # Deterministic synthetic parameters (nn.Linear(n_features, 1) shapes).
    x = jax.random.normal(k_x, (batch, n_features), dtype=jnp.float32)
    weight = jax.random.normal(k_w, (1, n_features), dtype=jnp.float32) * 0.1
    bias = jax.random.normal(k_b, (1,), dtype=jnp.float32) * 0.1

    ref = jax.nn.sigmoid(x @ weight.T + bias)

    # Default path: one large tile covering the whole batch.
    out_single = jax.block_until_ready(simple_lr_forward(x, weight, bias))
    # Forced multi-tile path: 3 grid steps of 128 rows, ragged last block.
    out_multi = jax.block_until_ready(
        simple_lr_forward(x, weight, bias, max_tile_b=128))
    # bf16-input path: x stays bf16 in HBM (half the DMA bytes), f32 accumulate.
    out_bf16 = jax.block_until_ready(
        simple_lr_forward(x.astype(jnp.bfloat16), weight, bias))

    assert out_single.shape == (batch, 1)
    assert out_multi.shape == (batch, 1)
    assert out_bf16.shape == (batch, 1)
    assert jnp.allclose(out_single, ref, atol=1e-5), "single-tile mismatch vs reference"
    assert jnp.allclose(out_multi, ref, atol=1e-5), "multi-tile mismatch vs reference"
    assert jnp.allclose(out_bf16, ref, atol=3e-2), "bf16-input mismatch vs reference"

    print("KERNEL_OK")
</pallas_src>

<mosaic_0001>
module attributes {stable_mosaic.version = 11 : i64} {
  func.func @_simple_lr_kernel(%arg0: i32, %arg1: memref<300x32xf32, #tpu.memory_space<vmem>>, %arg2: memref<1x32xf32, #tpu.memory_space<vmem>>, %arg3: memref<1x1xf32, #tpu.memory_space<smem>>, %arg4: memref<1x1x300xf32, #tpu.memory_space<vmem>>) attributes {dimension_semantics = [#tpu.dimension_semantics<parallel>], iteration_bounds = array<i64: 1>, scalar_prefetch = 0 : i64, scratch_operands = 0 : i64, tpu.core_type = #tpu.core_type<tc>, window_params = [{transform_indices = @transform_0, window_bounds = array<i64: 300, 32>}, {pipeline_mode = #tpu.pipeline_mode<synchronous>, transform_indices = @transform_1, window_bounds = array<i64: 1, 32>}, {transform_indices = @transform_2, window_bounds = array<i64: 1, 1>}, {transform_indices = @transform_3, window_bounds = array<i64: 1, 1, 300>}]} {
    %c0 = arith.constant 0 : index
    %c0_0 = arith.constant 0 : index
    %0 = vector.load %arg2[%c0, %c0_0] : memref<1x32xf32, #tpu.memory_space<vmem>>, vector<1x32xf32>
    %c0_1 = arith.constant 0 : index
    %c0_2 = arith.constant 0 : index
    %1 = vector.load %arg1[%c0_1, %c0_2] : memref<300x32xf32, #tpu.memory_space<vmem>>, vector<300x32xf32>
    %cst = arith.constant dense<0.000000e+00> : vector<1x300xf32>
    %2 = tpu.matmul %0, %1, %cst {dimension_numbers = #tpu.dot_dimension_numbers<[1], [1], [0], [0], [0, 0, 1, 0], [], []>} : vector<1x32xf32>, vector<300x32xf32>, vector<1x300xf32> -> vector<1x300xf32>
    %c0_3 = arith.constant 0 : index
    %c0_4 = arith.constant 0 : index
    %3 = memref.load %arg3[%c0_3, %c0_4] : memref<1x1xf32, #tpu.memory_space<smem>>
    %4 = vector.broadcast %3 : f32 to vector<1x300xf32>
    %5 = arith.addf %2, %4 : vector<1x300xf32>
    %6 = arith.negf %5 : vector<1x300xf32>
    %7 = math.exp %6 : vector<1x300xf32>
    %cst_5 = arith.constant 1.000000e+00 : f32
    %8 = vector.broadcast %cst_5 : f32 to vector<1x300xf32>
    %9 = arith.addf %8, %7 : vector<1x300xf32>
    %10 = arith.divf %8, %9 : vector<1x300xf32>
    %c0_6 = arith.constant 0 : index
    %c0_7 = arith.constant 0 : index
    %c0_8 = arith.constant 0 : index
    %11 = vector.load %arg4[%c0_6, %c0_7, %c0_8] : memref<1x1x300xf32, #tpu.memory_space<vmem>>, vector<1x1x300xf32>
    %12 = vector.shape_cast %11 : vector<1x1x300xf32> to vector<1x300xf32>
    %13 = vector.shape_cast %10 : vector<1x300xf32> to vector<1x1x300xf32>
    tpu.vector_store %arg4[%c0_6, %c0_7, %c0_8], %13 {strides = array<i32>} : memref<1x1x300xf32, #tpu.memory_space<vmem>>, vector<1x1x300xf32>,
    return
  }
  func.func @transform_0(%arg0: i32) -> (i32, i32) {
    %c0_i32 = arith.constant 0 : i32
    %c0_i32_0 = arith.constant 0 : i32
    return %arg0, %c0_i32 : i32, i32
  }
  func.func @transform_1(%arg0: i32) -> (i32, i32) {
    %c0_i32 = arith.constant 0 : i32
    %c0_i32_0 = arith.constant 0 : i32
    %c0_i32_1 = arith.constant 0 : i32
    return %c0_i32, %c0_i32_0 : i32, i32
  }
  func.func @transform_2(%arg0: i32) -> (i32, i32) {
    %c0_i32 = arith.constant 0 : i32
    %c0_i32_0 = arith.constant 0 : i32
    %c0_i32_1 = arith.constant 0 : i32
    return %c0_i32, %c0_i32_0 : i32, i32
  }
  func.func @transform_3(%arg0: i32) -> (i32, i32, i32) {
    %c0_i32 = arith.constant 0 : i32
    %c0_i32_0 = arith.constant 0 : i32
    %c0_i32_1 = arith.constant 0 : i32
    return %arg0, %c0_i32, %c0_i32_0 : i32, i32, i32
  }
}

</mosaic_0001>

<llo_original>
// kernel: simple_lr_forward.1
$region0: #{simple_lr_forward.1}
  #allocation0 [shape = 'u32[]', space=smem, size = 0x4, offset = 0x4, fixed_abs, tag = 'smem constant byte address 0x4 - core index']
  #allocation1 [shape = 'u32[144,128]{1,0:T(1,128)}', space=vmem, size = 0x12000, scoped, tag = 'internal scratch']
  #allocation2 [shape = 'f32[1,1]{1,0:T(1,128)S(6)}', space=smem, size = 0x200, scoped, tag = 'scoped memory for simple_lr_forward.1']
  %s0 = inlined_call_operand.vmem [shape: f32[300,32], index: 0, kind: input, shape index: {}]
  %s1 = inlined_call_operand.vmem [shape: f32[1,32], index: 1, kind: input, shape index: {}]
  %s2 = inlined_call_operand.<no memory space> [shape: f32[1,1], index: 2, kind: input, shape index: {}]
  %s3 = inlined_call_operand.hbm [shape: f32[1,1,300], index: 3, kind: output, shape index: {}]
  %s4 = sld [smem:[#allocation0]]
  $region22: #{simple_lr_forward.1} parent=0
    _
  %s6 = ssub.s32 1, %s4
  %s7 = scalar_select 0, %s6, %s4
  %8 = sst [smem:[#allocation2]] %s2
  $region1: #{simple_lr_forward.1} parent=0
    #allocation3 [shape = 'u8[1536]{0}', space=vmem, size = 0x800, scoped, tag = 'output window, operand 0, single buffered']
    #allocation4 [shape = 's32[1]{0}', space=sflag, size = 0x4, scoped, tag = 'scoped memory for simple_lr_forward.1']
    %9 = vsyncpa [#allocation4], 0
    // Predicated region
    $region2: #{simple_lr_forward.1} parent=1 // pred_check
      _
    $region3: #{simple_lr_forward.1} parent=1 // pred_check_branch
      %11 = sbr.rel (0) target = $region5
    $region4: #{simple_lr_forward.1} parent=1 // pred_region
      _
    $region5: #{simple_lr_forward.1} parent=1 // pred_fallthru
      _
    // Predicated region
    $region6: #{simple_lr_forward.1} parent=1 // pred_check
      _
    $region7: #{simple_lr_forward.1} parent=1 // pred_check_branch
      %13 = sbr.rel (0) target = $region9
    $region8: #{simple_lr_forward.1} parent=1 // pred_region
      _
    $region9: #{simple_lr_forward.1} parent=1 // pred_fallthru
      _
    // Predicated region
    $region10: #{simple_lr_forward.1} parent=1 // pred_check
      _
    $region11: #{simple_lr_forward.1} parent=1 // pred_check_branch
      %15 = sbr.rel (0) target = $region13
    $region12: #{simple_lr_forward.1} parent=1 // pred_region
      _
    $region13: #{simple_lr_forward.1} parent=1 // pred_fallthru
      _
    %v16 = vld [vmem:[%s1] sm:$0x1]
    %v17 = vld [vmem:[%s0] sm:$0xff]
    %v18 = vld [vmem:[%s0 + $0x8] sm:$0xff]
    %v19 = vld [vmem:[%s0 + $0x10] sm:$0xff]
    %v20 = vld [vmem:[%s0 + $0x18] sm:$0xff]
    %v21 = vld [vmem:[%s0 + $0x20] sm:$0xff]
    %v22 = vld [vmem:[%s0 + $0x28] sm:$0xff]
    %v23 = vld [vmem:[%s0 + $0x30] sm:$0xff]
    %v24 = vld [vmem:[%s0 + $0x38] sm:$0xff]
    %v25 = vld [vmem:[%s0 + $0x40] sm:$0xff]
    %v26 = vld [vmem:[%s0 + $0x48] sm:$0xff]
    %v27 = vld [vmem:[%s0 + $0x50] sm:$0xff]
    %v28 = vld [vmem:[%s0 + $0x58] sm:$0xff]
    %v29 = vld [vmem:[%s0 + $0x60] sm:$0xff]
    %v30 = vld [vmem:[%s0 + $0x68] sm:$0xff]
    %v31 = vld [vmem:[%s0 + $0x70] sm:$0xff]
    %v32 = vld [vmem:[%s0 + $0x78] sm:$0xff]
    %v33 = vld [vmem:[%s0 + $0x80] sm:$0xff]
    %v34 = vld [vmem:[%s0 + $0x88] sm:$0xff]
    %v35 = vld [vmem:[%s0 + $0x90] sm:$0xff]
    %v36 = vld [vmem:[%s0 + $0x98] sm:$0xff]
    %v37 = vld [vmem:[%s0 + $0xa0] sm:$0xff]
    %v38 = vld [vmem:[%s0 + $0xa8] sm:$0xff]
    %v39 = vld [vmem:[%s0 + $0xb0] sm:$0xff]
    %v40 = vld [vmem:[%s0 + $0xb8] sm:$0xff]
    %v41 = vld [vmem:[%s0 + $0xc0] sm:$0xff]
    %v42 = vld [vmem:[%s0 + $0xc8] sm:$0xff]
    %v43 = vld [vmem:[%s0 + $0xd0] sm:$0xff]
    %v44 = vld [vmem:[%s0 + $0xd8] sm:$0xff]
    %v45 = vld [vmem:[%s0 + $0xe0] sm:$0xff]
    %v46 = vld [vmem:[%s0 + $0xe8] sm:$0xff]
    %v47 = vld [vmem:[%s0 + $0xf0] sm:$0xff]
    %v48 = vld [vmem:[%s0 + $0xf8] sm:$0xff]
    %v49 = vld [vmem:[%s0 + $0x100] sm:$0xff]
    %v50 = vld [vmem:[%s0 + $0x108] sm:$0xff]
    %v51 = vld [vmem:[%s0 + $0x110] sm:$0xff]
    %v52 = vld [vmem:[%s0 + $0x118] sm:$0xff]
    %v53 = vld [vmem:[%s0 + $0x120] sm:$0xff]
    %v54 = vld [vmem:[%s0 + $0x128] sm:$0xf]
    %s55 = sld [smem:[#allocation2]]
    %v56 = vstv %s55
    %vm57 = vcmask 261120
    %v59 = vsel %vm57, %v16, 0
    %v62 = vsel %vm57, %v17, 0
    %v65 = vsel %vm57, %v18, 0
    %v68 = vsel %vm57, %v19, 0
    %v71 = vsel %vm57, %v20, 0
    %v74 = vsel %vm57, %v21, 0
    %v77 = vsel %vm57, %v22, 0
    %v80 = vsel %vm57, %v23, 0
    %v83 = vsel %vm57, %v24, 0
    %v86 = vsel %vm57, %v25, 0
    %v89 = vsel %vm57, %v26, 0
    %v92 = vsel %vm57, %v27, 0
    %v95 = vsel %vm57, %v28, 0
    %v98 = vsel %vm57, %v29, 0
    %v101 = vsel %vm57, %v30, 0
    %v104 = vsel %vm57, %v31, 0
    %v107 = vsel %vm57, %v32, 0
    %v110 = vsel %vm57, %v33, 0
    %v113 = vsel %vm57, %v34, 0
    %v116 = vsel %vm57, %v35, 0
    %v119 = vsel %vm57, %v36, 0
    %v122 = vsel %vm57, %v37, 0
    %v125 = vsel %vm57, %v38, 0
    %v128 = vsel %vm57, %v39, 0
    %v131 = vsel %vm57, %v40, 0
    %v134 = vsel %vm57, %v41, 0
    %v137 = vsel %vm57, %v42, 0
    %v140 = vsel %vm57, %v43, 0
    %v143 = vsel %vm57, %v44, 0
    %v146 = vsel %vm57, %v45, 0
    %v149 = vsel %vm57, %v46, 0
    %v152 = vsel %vm57, %v47, 0
    %v155 = vsel %vm57, %v48, 0
    %v158 = vsel %vm57, %v49, 0
    %v161 = vsel %vm57, %v50, 0
    %v164 = vsel %vm57, %v51, 0
    %v167 = vsel %vm57, %v52, 0
    %v170 = vsel %vm57, %v53, 0
    %v173 = vsel %vm57, %v54, 0
    %175 = vmatprep.subr.mxu0 0.0
    %176 = vmatpush1.xpose.msra.mxu0 %v62
    %177 = vmatprep.subr.mxu0 0.0
    %178 = vmatpush1.xpose.msra.mxu0 %v65
    %179 = vmatprep.subr.mxu0 0.0
    %180 = vmatpush1.xpose.msra.mxu0 %v68
    %181 = vmatprep.subr.mxu0 0.0
    %182 = vmatpush1.xpose.msra.mxu0 %v71
    %183 = vmatprep.subr.mxu0 0.0
    %184 = vmatpush1.xpose.msra.mxu0 %v74
    %185 = vmatprep.subr.mxu0 0.0
    %186 = vmatpush1.xpose.msra.mxu0 %v77
    %187 = vmatprep.subr.mxu0 0.0
    %188 = vmatpush1.xpose.msra.mxu0 %v80
    %189 = vmatprep.subr.mxu0 0.0
    %190 = vmatpush1.xpose.msra.mxu0 %v83
    %191 = vmatprep.subr.mxu0 0.0
    %192 = vmatpush1.xpose.msra.mxu0 %v86
    %193 = vmatprep.subr.mxu0 0.0
    %194 = vmatpush1.xpose.msra.mxu0 %v89
    %195 = vmatprep.subr.mxu0 0.0
    %196 = vmatpush1.xpose.msra.mxu0 %v92
    %197 = vmatprep.subr.mxu0 0.0
    %198 = vmatpush1.xpose.msra.mxu0 %v95
    %199 = vmatprep.subr.mxu0 0.0
    %200 = vmatpush1.xpose.msra.mxu0 %v98
    %201 = vmatprep.subr.mxu0 0.0
    %202 = vmatpush1.xpose.msra.mxu0 %v101
    %203 = vmatprep.subr.mxu0 0.0
    %204 = vmatpush1.xpose.msra.mxu0 %v104
    %205 = vmatprep.subr.mxu0 0.0
    %206 = vmatpush1.xpose.msra.mxu0 %v107
    %207 = vmatprep.subr.mxu0 0.0
    %208 = vmatpush1.xpose.msra.mxu0 %v110
    %209 = vmatprep.subr.mxu0 0.0
    %210 = vmatpush1.xpose.msra.mxu0 %v113
    %211 = vmatprep.subr.mxu0 0.0
    %212 = vmatpush1.xpose.msra.mxu0 %v116
    %213 = vmatprep.subr.mxu0 0.0
    %214 = vmatpush1.xpose.msra.mxu0 %v119
    %215 = vmatprep.subr.mxu0 0.0
    %216 = vmatpush1.xpose.msra.mxu0 %v122
    %217 = vmatprep.subr.mxu0 0.0
    %218 = vmatpush1.xpose.msra.mxu0 %v125
    %219 = vmatprep.subr.mxu0 0.0
    %220 = vmatpush1.xpose.msra.mxu0 %v128
    %221 = vmatprep.subr.mxu0 0.0
    %222 = vmatpush1.xpose.msra.mxu0 %v131
    %223 = vmatprep.subr.mxu0 0.0
    %224 = vmatpush1.xpose.msra.mxu0 %v134
    %225 = vmatprep.subr.mxu0 0.0
    %226 = vmatpush1.xpose.msra.mxu0 %v137
    %227 = vmatprep.subr.mxu0 0.0
    %228 = vmatpush1.xpose.msra.mxu0 %v140
    %229 = vmatprep.subr.mxu0 0.0
    %230 = vmatpush1.xpose.msra.mxu0 %v143
    %231 = vmatprep.subr.mxu0 0.0
    %232 = vmatpush1.xpose.msra.mxu0 %v146
    %233 = vmatprep.subr.mxu0 0.0
    %234 = vmatpush1.xpose.msra.mxu0 %v149
    %235 = vmatprep.subr.mxu0 0.0
    %236 = vmatpush1.xpose.msra.mxu0 %v152
    %237 = vmatprep.subr.mxu0 0.0
    %238 = vmatpush1.xpose.msra.mxu0 %v155
    %239 = vmatprep.mubr.f32.mxu0 0.0
    %240 = vmatmul.mubr.f32.gmra.mrb[0].mxu0 %v59
    %v241 = vpop.f32.mrb[0].mxu0
    %v242 = vadd.f32 %v56, %v241
    %v243 = vpop.f32.mrb[0].mxu0
    %v244 = vadd.f32 %v56, %v243
    %245 = vdwg.mxu0
    %246 = vmatprep.subr.mxu0 0.0
    %247 = vmatpush1.xpose.msra.mxu0 %v158
    %248 = vmatprep.subr.mxu0 0.0
    %249 = vmatpush1.xpose.msra.mxu0 %v161
    %250 = vmatprep.subr.mxu0 0.0
    %251 = vmatpush1.xpose.msra.mxu0 %v164
    %252 = vmatprep.subr.mxu0 0.0
    %253 = vmatpush1.xpose.msra.mxu0 %v167
    %254 = vmatprep.subr.mxu0 0.0
    %255 = vmatpush1.xpose.msra.mxu0 %v170
    %256 = vmatprep.subr.mxu0 0.0
    %257 = vmatpush1.xpose.msra.mxu0 %v173
    %258 = vmatprep.subr.mxu0 0.0
    %259 = vmatpush1.xpose.msra.mxu0 0.0
    %260 = vmatprep.subr.mxu0 0.0
    %261 = vmatpush1.xpose.msra.mxu0 0.0
    %262 = vmatprep.subr.mxu0 0.0
    %263 = vmatpush1.xpose.msra.mxu0 0.0
    %264 = vmatprep.subr.mxu0 0.0
    %265 = vmatpush1.xpose.msra.mxu0 0.0
    %266 = vmatprep.subr.mxu0 0.0
    %267 = vmatpush1.xpose.msra.mxu0 0.0
    %268 = vmatprep.subr.mxu0 0.0
    %269 = vmatpush1.xpose.msra.mxu0 0.0
    %270 = vmatprep.subr.mxu0 0.0
    %271 = vmatpush1.xpose.msra.mxu0 0.0
    %272 = vmatprep.subr.mxu0 0.0
    %273 = vmatpush1.xpose.msra.mxu0 0.0
    %274 = vmatprep.subr.mxu0 0.0
    %275 = vmatpush1.xpose.msra.mxu0 0.0
    %276 = vmatprep.subr.mxu0 0.0
    %277 = vmatpush1.xpose.msra.mxu0 0.0
    %278 = vmatprep.subr.mxu0 0.0
    %279 = vmatpush1.xpose.msra.mxu0 0.0
    %280 = vmatprep.subr.mxu0 0.0
    %281 = vmatpush1.xpose.msra.mxu0 0.0
    %282 = vmatprep.subr.mxu0 0.0
    %283 = vmatpush1.xpose.msra.mxu0 0.0
    %284 = vmatprep.subr.mxu0 0.0
    %285 = vmatpush1.xpose.msra.mxu0 0.0
    %286 = vmatprep.subr.mxu0 0.0
    %287 = vmatpush1.xpose.msra.mxu0 0.0
    %288 = vmatprep.subr.mxu0 0.0
    %289 = vmatpush1.xpose.msra.mxu0 0.0
    %290 = vmatprep.subr.mxu0 0.0
    %291 = vmatpush1.xpose.msra.mxu0 0.0
    %292 = vmatprep.subr.mxu0 0.0
    %293 = vmatpush1.xpose.msra.mxu0 0.0
    %294 = vmatprep.subr.mxu0 0.0
    %295 = vmatpush1.xpose.msra.mxu0 0.0
    %296 = vmatprep.subr.mxu0 0.0
    %297 = vmatpush1.xpose.msra.mxu0 0.0
    %298 = vmatprep.subr.mxu0 0.0
    %299 = vmatpush1.xpose.msra.mxu0 0.0
    %300 = vmatprep.subr.mxu0 0.0
    %301 = vmatpush1.xpose.msra.mxu0 0.0
    %302 = vmatprep.subr.mxu0 0.0
    %303 = vmatpush1.xpose.msra.mxu0 0.0
    %304 = vmatprep.subr.mxu0 0.0
    %305 = vmatpush1.xpose.msra.mxu0 0.0
    %306 = vmatprep.subr.mxu0 0.0
    %307 = vmatpush1.xpose.msra.mxu0 0.0
    %308 = vmatprep.subr.mxu0 0.0
    %309 = vmatpush1.xpose.msra.mxu0 0.0
    %310 = vmatprep.mubr.f32.mxu0 0.0
    %311 = vmatmul.mubr.f32.gmra.mrb[0].mxu0 %v59
    %v312 = vpop.f32.mrb[0].mxu0
    %v313 = vadd.f32 %v56, %v312
    %v314 = vpop.f32.mrb[0].mxu0
    %315 = vdwg.mxu0
    %v316 = vxor.u32 %v242, 2147483648
    %v317 = vxor.u32 %v244, 2147483648
    %v318 = vxor.u32 %v313, 2147483648
    %v319 = vmul.f32 %v316, 1.442695
    %v320 = vpow.pop %v319
    %v321 = vmul.f32 %v317, 1.442695
    %v322 = vpow.pop %v321
    %v323 = vmul.f32 %v318, 1.442695
    %v324 = vpow.pop %v323
    %v325 = vadd.f32 %v320, 1.0
    %v326 = vadd.f32 %v322, 1.0
    %v327 = vadd.f32 %v324, 1.0
    %v328 = vrcp.pop %v325
    %v329 = vmul.f32 1.0, %v328
    %v330 = vrcp.pop %v326
    %v331 = vmul.f32 1.0, %v330
    %v332 = vrcp.pop %v327
    %v333 = vmul.f32 1.0, %v332
    %v337 = vcombine.low %v329, %v331
    %v339 = vunpack.c.l.s4 1966171168
    %v340 = vunpack.c.0.s8 %v339
    %v341 = vlaneseq
    %v342 = vshrl.u32 %v341, 7
    %v343 = vsub.s32 %v340, %v342
    %v344 = vrot.slane %v337, %v343
    %v346 = vunpack.c.l.s4 1966171168
    %v347 = vunpack.c.0.s8 %v346
    %v348 = vlaneseq
    %v349 = vshrl.u32 %v348, 7
    %v350 = vsub.s32 %v347, %v349
    %v351 = vrot.slane %v333, %v350
    %v352 = vcombine.low %v344, %v351
    %v354 = vunpack.c.l.s4 1966171168
    %v355 = vunpack.c.0.s8 %v354
    %v356 = vlaneseq
    %v357 = vshrl.u32 %v356, 7
    %v358 = vsub.s32 %v355, %v357
    %v359 = vrot.slane %v352, %v358
    %v361 = vlaneseq
    %vm362 = vcmp.ge.s32.totalorder %v361, 0
    %vm363 = vcmp.lt.s32.totalorder %v361, 300
    %vm364 = vmand %vm362, %vm363
    %365 = vst.msk [vmem:[#allocation3] sm:$0x7] %vm364, %v359
    // Predicated region
    $region14: #{simple_lr_forward.1} parent=1 // pred_check
      _
    $region15: #{simple_lr_forward.1} parent=1 // pred_check_branch
      %367 = sbr.rel (0) target = $region17
    $region16: #{simple_lr_forward.1} parent=1 // pred_region
      %s369 = ssub.s32 48, 48
      %370 = vsyncadd [#allocation4], %s369
      %s372 = sshll.u32 [#allocation3], 4
      %s373 = int_to_ptr.vmem [resolvable:$true] %s372
      %375 = dma.vmem_to_hbm [thread:$0]  %s373, 48, %s3, [#allocation4]
    $region17: #{simple_lr_forward.1} parent=1 // pred_fallthru
      _
    // Predicated region
    $region18: #{simple_lr_forward.1} parent=1 // pred_check
      _
    $region19: #{simple_lr_forward.1} parent=1 // pred_check_branch
      %377 = sbr.rel (0) target = $region21
    $region20: #{simple_lr_forward.1} parent=1 // pred_region
      %378 = dma.done [#allocation4], 48
    $region21: #{simple_lr_forward.1} parent=1 // pred_fallthru
      _
    %379 = vsyncpa [#allocation4], 1

</llo_original>
